<compile_context>
chip_gen: v7x
topology: tpu7x:2x2x1
jax: 0.10.0
libtpu: 0.0.40
codegen_flags: <defaults>
</compile_context>

<pallas_src>
import math

import jax
import jax.numpy as jnp
from jax.experimental import pallas as pl
from jax.experimental.pallas import tpu as pltpu

_HALF_LOG_2PI = 0.5 * math.log(2.0 * math.pi)


def _round_up(x: int, m: int) -> int:
    return ((x + m - 1) // m) * m


def _choose_tile_rows(n_rows: int, tile_rows: int) -> int:
    """Row-tile size: multiple of 8 sublanes, >= 2 grid steps when possible."""
    if n_rows < 16:
        return max(_round_up(n_rows, 8), 8)
    # Keep at least two grid steps so dimension_semantics=("parallel",) can
    # shard the grid across both TensorCores on v7x.
    half = _round_up(-(-n_rows // 2), 8)
    return max(8, min(_round_up(tile_rows, 8), half))


_COMPILER_PARAMS = pltpu.CompilerParams(
    dimension_semantics=("parallel",),
    # KL / fused kernels at the default tile keep well under this; explicit
    # limit avoids the 16 MiB scoped default on v5e biting at larger tiles.
    vmem_limit_bytes=40 * 1024 * 1024,
)


# ---------------------------------------------------------------------------
# Kernels — natural (B, M) layout: (TB, M) row tiles in, (TB, 1) per-row out.
# All in-kernel math (VALU mul, XLU lane reduce, EUP log) hides under the DMA
# stream; these kernels are bandwidth / step-overhead bound.
# ---------------------------------------------------------------------------

def _logprob_kernel(z_ref, out_ref):
    """log N(z; 0, I) for a (TB, M) tile of z -> (TB, 1)."""
    z = z_ref[...].astype(jnp.float32)                  # in-vreg upcast (free)
    m = z.shape[-1]
    out_ref[...] = -0.5 * jnp.sum(z * z, axis=-1, keepdims=True) - m * _HALF_LOG_2PI


def _kl_kernel(mu_ref, sig_ref, out_ref):
    """KL( N(mu, diag sigma^2) || N(0, I) ) summed over the event dim M."""
    mu = mu_ref[...].astype(jnp.float32)
    sig = sig_ref[...].astype(jnp.float32)
    # TODO(synk): if the encoder parameterizes log-variance, take logvar
    # directly and use 0.5*(exp(logvar) + mu^2 - 1 - logvar) (drops this log).
    kl = 0.5 * (sig * sig + mu * mu - 1.0) - jnp.log(sig)
    out_ref[...] = jnp.sum(kl, axis=-1, keepdims=True)


def _rsample_kl_kernel(mu_ref, sig_ref, eps_ref, z_ref, kl_ref):
    """Fused reparameterized sample z = mu + sigma*eps and per-sample KL."""
    mu = mu_ref[...].astype(jnp.float32)
    sig = sig_ref[...].astype(jnp.float32)
    eps = eps_ref[...].astype(jnp.float32)
    z_ref[...] = (mu + sig * eps).astype(z_ref.dtype)
    kl = 0.5 * (sig * sig + mu * mu - 1.0) - jnp.log(sig)
    kl_ref[...] = jnp.sum(kl, axis=-1, keepdims=True)


# ---------------------------------------------------------------------------
# Wrappers
# ---------------------------------------------------------------------------

class VAEGaussianKernels:
    """Pallas port of the VAE prior/posterior distribution math over R^M."""

    def __init__(self, M: int, *, tile_rows: int = 32768):
        # tile_rows * M * 4 B per f32 input block (4 MiB at M=32, tile_rows=32768)
        self.M = M
        self.tile_rows = tile_rows

    # ---- log p(z) under the prior N(0, I) -----------------------------------
    def log_prob(self, z: jax.Array) -> jax.Array:
        """z: (B, M) -> (B,) log-density under N(0, I)."""
        B, M = z.shape
        assert M == self.M
        TB = _choose_tile_rows(B, self.tile_rows)
        out = pl.pallas_call(
            _logprob_kernel,
            out_shape=jax.ShapeDtypeStruct((B, 1), jnp.float32),
            grid=(pl.cdiv(B, TB),),
            in_specs=[pl.BlockSpec((TB, M), lambda i: (i, 0))],
            out_specs=pl.BlockSpec((TB, 1), lambda i: (i, 0)),
            compiler_params=_COMPILER_PARAMS,
        )(z)
        return out[:, 0]

    # ---- KL(q || prior), the `kl` term of VAE.elbo/forward -------------------
    def kl_to_prior(self, mu: jax.Array, sigma: jax.Array) -> jax.Array:
        """mu, sigma: (B, M) -> (B,) KL(N(mu, diag sigma^2) || N(0, I))."""
        B, M = mu.shape
        assert M == self.M and sigma.shape == (B, M)
        TB = _choose_tile_rows(B, self.tile_rows)
        out = pl.pallas_call(
            _kl_kernel,
            out_shape=jax.ShapeDtypeStruct((B, 1), jnp.float32),
            grid=(pl.cdiv(B, TB),),
            in_specs=[pl.BlockSpec((TB, M), lambda i: (i, 0)),
                      pl.BlockSpec((TB, M), lambda i: (i, 0))],
            out_specs=pl.BlockSpec((TB, 1), lambda i: (i, 0)),
            compiler_params=_COMPILER_PARAMS,
        )(mu, sigma)
        return out[:, 0]

    # ---- fused q.rsample() + KL (the elbo forward path) ----------------------
    def rsample_and_kl(self, mu: jax.Array, sigma: jax.Array, key, *, z_dtype=None):
        """Returns (z, kl): z = mu + sigma*eps (eps ~ N(0,I)), kl per sample."""
        B, M = mu.shape
        assert M == self.M and sigma.shape == (B, M)
        z_dtype = mu.dtype if z_dtype is None else z_dtype
        # TODO(synk): on real TPU hardware, eps could be generated on-chip with
        # pltpu.prng_seed + pltpu.stateful_normal (no eps HBM stream); those
        # primitives have no interpret/CPU lowering, so eps is streamed in.
        eps = jax.random.normal(key, (B, M), dtype=jnp.float32)
        TB = _choose_tile_rows(B, max(8, self.tile_rows // 2))  # 3 in + 1 wide out
        z, kl = pl.pallas_call(
            _rsample_kl_kernel,
            out_shape=(jax.ShapeDtypeStruct((B, M), z_dtype),
                       jax.ShapeDtypeStruct((B, 1), jnp.float32)),
            grid=(pl.cdiv(B, TB),),
            in_specs=[pl.BlockSpec((TB, M), lambda i: (i, 0)),
                      pl.BlockSpec((TB, M), lambda i: (i, 0)),
                      pl.BlockSpec((TB, M), lambda i: (i, 0))],
            out_specs=(pl.BlockSpec((TB, M), lambda i: (i, 0)),
                       pl.BlockSpec((TB, 1), lambda i: (i, 0))),
            compiler_params=_COMPILER_PARAMS,
        )(mu, sigma, eps)
        return z, kl[:, 0]

    # ---- z ~ N(0, I) (prior().sample) ----------------------------------------
    def sample(self, key, sample_shape=(1,), dtype=jnp.float32) -> jax.Array:
        # TODO(synk): on-chip pltpu PRNG would avoid this HBM write on real
        # hardware; jax.random.normal keeps prior().sample semantics portably.
        return jax.random.normal(key, (*sample_shape, self.M), dtype=dtype)


# TODO(synk): the graph encoder/decoder submodules (constructor args of VAE),
# to_dense_adj, the torch.randperm adjacency-permutation loop and torch.tril
# are data-dependent host/graph preprocessing or undefined submodules and have
# no clean Pallas equivalent here; only the prior/KL/rsample math of the
# forward path is kernel-ized.


if __name__ == "__main__":
    M = 32        # latent dimension (graph-VAE config)
    B = 300       # latent vectors / graphs in the batch (non-aligned on purpose)

    # Small tile so the demo exercises a multi-step grid with a partial tail
    # tile; production keeps the default tile_rows=32768.
    kern = VAEGaussianKernels(M, tile_rows=128)

    key = jax.random.PRNGKey(0)
    k_z, k_mu, k_sig, k_eps, k_smp = jax.random.split(key, 5)
    z = jax.random.normal(k_z, (B, M), dtype=jnp.float32)
    mu = 0.5 * jax.random.normal(k_mu, (B, M), dtype=jnp.float32)
    sigma = jnp.exp(0.3 * jax.random.normal(k_sig, (B, M), dtype=jnp.float32))

    lp = kern.log_prob(z)
    kl = kern.kl_to_prior(mu, sigma)
    z_s, kl_f = kern.rsample_and_kl(mu, sigma, k_eps)
    smp = kern.sample(k_smp, sample_shape=(7,))
    lp_bf = kern.log_prob(z.astype(jnp.bfloat16))          # no-upcast bf16 path
    jax.block_until_ready((lp, kl, z_s, kl_f, smp, lp_bf))

    # Pure-JAX references of the torch.distributions semantics.
    lp_ref = jnp.sum(-0.5 * z * z - _HALF_LOG_2PI, axis=-1)
    kl_ref = jnp.sum(0.5 * (sigma ** 2 + mu ** 2 - 1.0) - jnp.log(sigma), axis=-1)
    eps_ref = jax.random.normal(k_eps, (B, M), dtype=jnp.float32)
    z_ref = mu + sigma * eps_ref
    zb = z.astype(jnp.bfloat16).astype(jnp.float32)
    lp_bf_ref = jnp.sum(-0.5 * zb * zb - _HALF_LOG_2PI, axis=-1)

    assert lp.shape == (B,) and kl.shape == (B,) and kl_f.shape == (B,)
    assert z_s.shape == (B, M) and smp.shape == (7, M)
    assert jnp.allclose(lp, lp_ref, atol=1e-4, rtol=1e-5)
    assert jnp.allclose(kl, kl_ref, atol=1e-4, rtol=1e-5)
    assert jnp.allclose(kl_f, kl_ref, atol=1e-4, rtol=1e-5)
    assert jnp.allclose(z_s, z_ref, atol=1e-5, rtol=1e-5)
    assert jnp.allclose(lp_bf, lp_bf_ref, atol=2e-2, rtol=1e-3)
    assert bool(jnp.all(jnp.isfinite(smp)))

    print("KERNEL_OK")
</pallas_src>

<mosaic_0001>
module attributes {stable_mosaic.version = 11 : i64} {
  func.func @_logprob_kernel(%arg0: i32, %arg1: memref<128x32xf32, #tpu.memory_space<vmem>>, %arg2: memref<128x1xf32, #tpu.memory_space<vmem>>) attributes {dimension_semantics = [#tpu.dimension_semantics<parallel>], iteration_bounds = array<i64: 3>, scalar_prefetch = 0 : i64, scratch_operands = 0 : i64, tpu.core_type = #tpu.core_type<tc>, window_params = [{transform_indices = @transform_0, window_bounds = array<i64: 128, 32>}, {transform_indices = @transform_1, window_bounds = array<i64: 128, 1>}]} {
    %c0 = arith.constant 0 : index
    %c0_0 = arith.constant 0 : index
    %0 = vector.load %arg1[%c0, %c0_0] : memref<128x32xf32, #tpu.memory_space<vmem>>, vector<128x32xf32>
    %1 = arith.mulf %0, %0 : vector<128x32xf32>
    %cst = arith.constant dense<0.000000e+00> : vector<128xf32>
    %2 = vector.multi_reduction <add>, %1, %cst [1] : vector<128x32xf32> to vector<128xf32>
    %3 = vector.shape_cast %2 : vector<128xf32> to vector<128x1xf32>
    %cst_1 = arith.constant -5.000000e-01 : f32
    %4 = vector.broadcast %cst_1 : f32 to vector<128x1xf32>
    %5 = arith.mulf %4, %3 : vector<128x1xf32>
    %cst_2 = arith.constant 29.4060326 : f32
    %6 = vector.broadcast %cst_2 : f32 to vector<128x1xf32>
    %7 = arith.subf %5, %6 : vector<128x1xf32>
    %c0_3 = arith.constant 0 : index
    %c0_4 = arith.constant 0 : index
    %8 = vector.load %arg2[%c0_3, %c0_4] : memref<128x1xf32, #tpu.memory_space<vmem>>, vector<128x1xf32>
    tpu.vector_store %arg2[%c0_3, %c0_4], %7 {strides = array<i32>} : memref<128x1xf32, #tpu.memory_space<vmem>>, vector<128x1xf32>,
    return
  }
  func.func @transform_0(%arg0: i32) -> (i32, i32) {
    %c0_i32 = arith.constant 0 : i32
    %c0_i32_0 = arith.constant 0 : i32
    return %arg0, %c0_i32 : i32, i32
  }
  func.func @transform_1(%arg0: i32) -> (i32, i32) {
    %c0_i32 = arith.constant 0 : i32
    %c0_i32_0 = arith.constant 0 : i32
    return %arg0, %c0_i32 : i32, i32
  }
}

</mosaic_0001>

<llo_original>
// kernel: tpu_custom_call.1
$region0: #{tpu_custom_call.1}
  #allocation0 [shape = 'u32[]', space=smem, size = 0x4, offset = 0x4, fixed_abs, tag = 'smem constant byte address 0x4 - core index']
  #allocation1 [shape = 'u32[144,128]{1,0:T(1,128)}', space=vmem, size = 0x12000, scoped, tag = 'internal scratch']
  %s0 = inlined_call_operand.vmem [shape: f32[300,32], index: 0, kind: input, shape index: {}]
  %s1 = inlined_call_operand.vmem [shape: f32[300,1], index: 1, kind: output, shape index: {}]
  %s2 = sld [smem:[#allocation0]]
  $region85: #{tpu_custom_call.1} parent=0
    _
  %s4 = ssub.s32 1, %s2
  %s5 = scalar_select 0, %s4, %s2
  $region1: #{tpu_custom_call.1} parent=0
    #allocation2 [shape = 'u8[131072]{0}', space=vmem, size = 0x20000, scoped, tag = 'output window, operand 0']
    loop: start=0, step=1, limit=5
    $region2: #{tpu_custom_call.1} parent=1 // loop_pre_header
      _
    $region3: #{tpu_custom_call.1} parent=1 // loop_header
      %s7 = sphi 0, %s11
      %p8 = scmp.ge.s32.totalorder %s7, 5
      %s17 = sphi 0, %s19
      %s20 = sphi 0, %s17
      %s21 = sphi 0, %s20
      %s37 = sphi 0, %s21
      %s43 = sphi 0, %s45
      %s46 = sphi 0, %s43
      %s47 = sphi 0, %s46
      %s63 = sphi 0, %s47
    $region4: #{tpu_custom_call.1} parent=1 // loop_header_branch
      %10 = sbr.rel (%p8) target = $region8
    $region5: #{tpu_custom_call.1} parent=1 // loop_body
      %s12 = ssub.s32 %s7, 1
      %s13 = ssub.s32 %s7, 2
      %s14 = sadd.s32 %s7, 1
      %s15 = ssub.s32 %s7, %s14
      %p16 = scmp.eq.s32.totalorder %s15, 0
      %s18 = sadd.s32 %s17, 1
      %s19 = scalar_select %p16, %s17, %s18
      %p22 = pneg %p16
      %p23 = scmp.eq.s32.totalorder %s7, 2
      %p24 = por %p22, %p23
      %p25 = scmp.ne.s32.totalorder %s17, %s20
      %p26 = scmp.eq.s32.totalorder %s7, 0
      %p27 = por %p25, %p26
      %p28 = scmp.ne.s32.totalorder %s17, %s20
      %p29 = scmp.eq.s32.totalorder %s12, 2
      %p30 = por %p28, %p29
      %p31 = scmp.ne.s32.totalorder %s20, %s21
      %p32 = scmp.eq.s32.totalorder %s12, 0
      %p33 = por %p31, %p32
      %p34 = scmp.ne.s32.totalorder %s20, %s21
      %p35 = scmp.eq.s32.totalorder %s13, 2
      %p36 = por %p34, %p35
      %p38 = scmp.ne.s32.totalorder %s21, %s37
      %p39 = scmp.eq.s32.totalorder %s13, 0
      %p40 = por %p38, %p39
      %s41 = ssub.s32 %s7, %s14
      %p42 = scmp.eq.s32.totalorder %s41, 0
      %s44 = sadd.s32 %s43, 1
      %s45 = scalar_select %p42, %s43, %s44
      %p48 = pneg %p42
      %p49 = scmp.eq.s32.totalorder %s7, 2
      %p50 = por %p48, %p49
      %p51 = scmp.ne.s32.totalorder %s43, %s46
      %p52 = scmp.eq.s32.totalorder %s7, 0
      %p53 = por %p51, %p52
      %p54 = scmp.ne.s32.totalorder %s43, %s46
      %p55 = scmp.eq.s32.totalorder %s12, 2
      %p56 = por %p54, %p55
      %p57 = scmp.ne.s32.totalorder %s46, %s47
      %p58 = scmp.eq.s32.totalorder %s12, 0
      %p59 = por %p57, %p58
      %p60 = scmp.ne.s32.totalorder %s46, %s47
      %p61 = scmp.eq.s32.totalorder %s13, 2
      %p62 = por %p60, %p61
      %p64 = scmp.ne.s32.totalorder %s47, %s63
      %p65 = scmp.eq.s32.totalorder %s13, 0
      %p66 = por %p64, %p65
      %p67 = scmp.le.s32.totalorder 1, %s7
      %p68 = scmp.lt.s32.totalorder %s7, 4
      %p69 = pnand %p67, %p68
      %p70 = pneg %p69
      // Predicated region
      $region9: #{tpu_custom_call.1} parent=5 // pred_check
        _
      $region10: #{tpu_custom_call.1} parent=5 // pred_check_branch
        %72 = sbr.rel (%p69) target = $region12
      $region11: #{tpu_custom_call.1} parent=5 // pred_region
        %s73 = ssub.s32 %s7, 1
      $region12: #{tpu_custom_call.1} parent=5 // pred_fallthru
        _
      %p74 = scmp.lt.s32.totalorder %s7, 3
      // Predicated region
      $region13: #{tpu_custom_call.1} parent=5 // pred_check
        %p75 = pneg %p74
      $region14: #{tpu_custom_call.1} parent=5 // pred_check_branch
        %77 = sbr.rel (%p75) target = $region16
      $region15: #{tpu_custom_call.1} parent=5 // pred_region
        // Predicated region
        $region17: #{tpu_custom_call.1} parent=15 // pred_check
          %p78 = pneg %p27
        $region18: #{tpu_custom_call.1} parent=15 // pred_check_branch
          %80 = sbr.rel (%p78) target = $region20
        $region19: #{tpu_custom_call.1} parent=15 // pred_region
          %s81 = smul.u32 16, %s7
          %s82 = ssub.s32 38, %s81
          %p83 = scmp.lt.s32.totalorder %s82, 16
          %s84 = scalar_select %p83, %s82, 16
          %s85 = smul.u32 128, %s84
          %p86 = scmp.lt.s32.totalorder %s81, 37
          %s87 = scalar_select %p86, %s81, 37
          %s88 = smul.addr %s87, 8
          %s89 = scalar_lea.vmem %s0, %s88
          %s90 = smul.u32 16, %s7
          %s91 = ssub.s32 38, %s90
          %p92 = scmp.lt.s32.totalorder %s91, 16
          %s93 = scalar_select %p92, %s91, 16
          %s94 = smul.u32 128, %s93
        $region20: #{tpu_custom_call.1} parent=15 // pred_fallthru
          _
      $region16: #{tpu_custom_call.1} parent=5 // pred_fallthru
        _
      %p95 = scmp.le.s32.totalorder 1, %s7
      %p96 = scmp.lt.s32.totalorder %s7, 4
      %p97 = pnand %p95, %p96
      %p98 = pneg %p97
      // Predicated region
      $region21: #{tpu_custom_call.1} parent=5 // pred_check
        _
      $region22: #{tpu_custom_call.1} parent=5 // pred_check_branch
        %100 = sbr.rel (%p97) target = $region24
      $region23: #{tpu_custom_call.1} parent=5 // pred_region
        %s101 = ssub.s32 %s7, 1
        %s102 = smul.u32 16, %s12
        %s103 = ssub.s32 38, %s102
        %p104 = scmp.lt.s32.totalorder %s103, 16
        %s105 = scalar_select %p104, %s103, 16
        %s106 = smul.u32 128, %s105
        %p107 = scmp.lt.s32.totalorder %s102, 37
        %s108 = scalar_select %p107, %s102, 37
        %s109 = smul.addr %s108, 8
        %s110 = scalar_lea.vmem %s0, %s109
        %p111 = pneg %p33
        %p112 = pneg %p30
        %p113 = pneg %p59
        %p114 = pneg %p56
        %s115 = sand.u32 %s46, 1
        %s116 = sand.u32 %s46, 1
        %s117 = smul.addr %s116, 128
        %s118 = scalar_lea.vmem [#allocation2], %s117
        %s119 = smul.u32 16, %s12
        %s120 = ssub.s32 38, %s119
        %p121 = scmp.lt.s32.totalorder %s120, 16
        %s122 = scalar_select %p121, %s120, 16
        %s123 = smul.u32 128, %s122
        %p124 = scmp.lt.s32.totalorder %s119, 37
        %s125 = scalar_select %p124, %s119, 37
        %s126 = smul.addr %s125, 8
        %s127 = scalar_lea.vmem %s0, %s126
        %s128 = smul.u32 16, %s12
        %s129 = ssub.s32 38, %s128
        %p130 = scmp.lt.s32.totalorder %s129, 16
        %s131 = scalar_select %p130, %s129, 16
        %s132 = smul.u32 128, %s131
        %s133 = smul.u32 16, %s12
        %s134 = ssub.s32 38, %s133
        %p135 = scmp.lt.s32.totalorder %s134, 16
        %s136 = scalar_select %p135, %s134, 16
        %s137 = smul.u32 128, %s136
        %v138 = vld [vmem:[%s127] sm:$0xff]
        %v139 = vld [vmem:[%s127 + $0x8] sm:$0xff]
        %v140 = vld [vmem:[%s127 + $0x10] sm:$0xff]
        %v141 = vld [vmem:[%s127 + $0x18] sm:$0xff]
        %v142 = vld [vmem:[%s127 + $0x20] sm:$0xff]
        %v143 = vld [vmem:[%s127 + $0x28] sm:$0xff]
        %v144 = vld [vmem:[%s127 + $0x30] sm:$0xff]
        %v145 = vld [vmem:[%s127 + $0x38] sm:$0xff]
        %v146 = vld [vmem:[%s127 + $0x40] sm:$0xff]
        %v147 = vld [vmem:[%s127 + $0x48] sm:$0xff]
        %v148 = vld [vmem:[%s127 + $0x50] sm:$0xff]
        %v149 = vld [vmem:[%s127 + $0x58] sm:$0xff]
        %v150 = vld [vmem:[%s127 + $0x60] sm:$0xff]
        %v151 = vld [vmem:[%s127 + $0x68] sm:$0xff]
        %v152 = vld [vmem:[%s127 + $0x70] sm:$0xff]
        %v153 = vld [vmem:[%s127 + $0x78] sm:$0xff]
        %v154 = vmul.f32 %v138, %v138
        %v155 = vmul.f32 %v139, %v139
        %v156 = vmul.f32 %v140, %v140
        %v157 = vmul.f32 %v141, %v141
        %v158 = vmul.f32 %v142, %v142
        %v159 = vmul.f32 %v143, %v143
        %v160 = vmul.f32 %v144, %v144
        %v161 = vmul.f32 %v145, %v145
        %v162 = vmul.f32 %v146, %v146
        %v163 = vmul.f32 %v147, %v147
        %v164 = vmul.f32 %v148, %v148
        %v165 = vmul.f32 %v149, %v149
        %v166 = vmul.f32 %v150, %v150
        %v167 = vmul.f32 %v151, %v151
        %v168 = vmul.f32 %v152, %v152
        %v169 = vmul.f32 %v153, %v153
        %vm170 = vcmask 261120
        %v171 = vsel %vm170, %v154, 0.0
        %172 = vadd.xlane.f32.xlu0 %v171
        %v173 = vpop.xlane.xlu0 %172
        %v174 = vsel %vm170, %v155, 0.0
        %175 = vadd.xlane.f32.xlu0 %v174
        %v176 = vpop.xlane.xlu0 %175
        %v177 = vsel %vm170, %v156, 0.0
        %178 = vadd.xlane.f32.xlu0 %v177
        %v179 = vpop.xlane.xlu0 %178
        %v180 = vsel %vm170, %v157, 0.0
        %181 = vadd.xlane.f32.xlu0 %v180
        %v182 = vpop.xlane.xlu0 %181
        %v183 = vsel %vm170, %v158, 0.0
        %184 = vadd.xlane.f32.xlu0 %v183
        %v185 = vpop.xlane.xlu0 %184
        %v186 = vsel %vm170, %v159, 0.0
        %187 = vadd.xlane.f32.xlu0 %v186
        %v188 = vpop.xlane.xlu0 %187
        %v189 = vsel %vm170, %v160, 0.0
        %190 = vadd.xlane.f32.xlu0 %v189
        %v191 = vpop.xlane.xlu0 %190
        %v192 = vsel %vm170, %v161, 0.0
        %193 = vadd.xlane.f32.xlu0 %v192
        %v194 = vpop.xlane.xlu0 %193
        %v195 = vsel %vm170, %v162, 0.0
        %196 = vadd.xlane.f32.xlu0 %v195
        %v197 = vpop.xlane.xlu0 %196
        %v198 = vsel %vm170, %v163, 0.0
        %199 = vadd.xlane.f32.xlu0 %v198
        %v200 = vpop.xlane.xlu0 %199
        %v201 = vsel %vm170, %v164, 0.0
        %202 = vadd.xlane.f32.xlu0 %v201
        %v203 = vpop.xlane.xlu0 %202
        %v204 = vsel %vm170, %v165, 0.0
        %205 = vadd.xlane.f32.xlu0 %v204
        %v206 = vpop.xlane.xlu0 %205
        %v207 = vsel %vm170, %v166, 0.0
        %208 = vadd.xlane.f32.xlu0 %v207
        %v209 = vpop.xlane.xlu0 %208
        %v210 = vsel %vm170, %v167, 0.0
        %211 = vadd.xlane.f32.xlu0 %v210
        %v212 = vpop.xlane.xlu0 %211
        %v213 = vsel %vm170, %v168, 0.0
        %214 = vadd.xlane.f32.xlu0 %v213
        %v215 = vpop.xlane.xlu0 %214
        %v216 = vsel %vm170, %v169, 0.0
        %217 = vadd.xlane.f32.xlu0 %v216
        %v218 = vpop.xlane.xlu0 %217
        %v219 = vmul.f32 %v173, -0.5
        %v220 = vmul.f32 %v176, -0.5
        %v221 = vmul.f32 %v179, -0.5
        %v222 = vmul.f32 %v182, -0.5
        %v223 = vmul.f32 %v185, -0.5
        %v224 = vmul.f32 %v188, -0.5
        %v225 = vmul.f32 %v191, -0.5
        %v226 = vmul.f32 %v194, -0.5
        %v227 = vmul.f32 %v197, -0.5
        %v228 = vmul.f32 %v200, -0.5
        %v229 = vmul.f32 %v203, -0.5
        %v230 = vmul.f32 %v206, -0.5
        %v231 = vmul.f32 %v209, -0.5
        %v232 = vmul.f32 %v212, -0.5
        %v233 = vmul.f32 %v215, -0.5
        %v234 = vmul.f32 %v218, -0.5
        %v235 = vsub.f32 %v219, 29.406033
        %v236 = vsub.f32 %v220, 29.406033
        %v237 = vsub.f32 %v221, 29.406033
        %v238 = vsub.f32 %v222, 29.406033
        %v239 = vsub.f32 %v223, 29.406033
        %v240 = vsub.f32 %v224, 29.406033
        %v241 = vsub.f32 %v225, 29.406033
        %v242 = vsub.f32 %v226, 29.406033
        %v243 = vsub.f32 %v227, 29.406033
        %v244 = vsub.f32 %v228, 29.406033
        %v245 = vsub.f32 %v229, 29.406033
        %v246 = vsub.f32 %v230, 29.406033
        %v247 = vsub.f32 %v231, 29.406033
        %v248 = vsub.f32 %v232, 29.406033
        %v249 = vsub.f32 %v233, 29.406033
        %v250 = vsub.f32 %v234, 29.406033
        %vm251 = vcmask 7168
        %252 = vst.msk [vmem:[%s118] sm:$0xff] %vm251, %v235
        %253 = vst.msk [vmem:[%s118 + $0x8] sm:$0xff] %vm251, %v236
        %254 = vst.msk [vmem:[%s118 + $0x10] sm:$0xff] %vm251, %v237
        %255 = vst.msk [vmem:[%s118 + $0x18] sm:$0xff] %vm251, %v238
        %256 = vst.msk [vmem:[%s118 + $0x20] sm:$0xff] %vm251, %v239
        %257 = vst.msk [vmem:[%s118 + $0x28] sm:$0xff] %vm251, %v240
        %258 = vst.msk [vmem:[%s118 + $0x30] sm:$0xff] %vm251, %v241
        %259 = vst.msk [vmem:[%s118 + $0x38] sm:$0xff] %vm251, %v242
        %260 = vst.msk [vmem:[%s118 + $0x40] sm:$0xff] %vm251, %v243
        %261 = vst.msk [vmem:[%s118 + $0x48] sm:$0xff] %vm251, %v244
        %262 = vst.msk [vmem:[%s118 + $0x50] sm:$0xff] %vm251, %v245
        %263 = vst.msk [vmem:[%s118 + $0x58] sm:$0xff] %vm251, %v246
        %264 = vst.msk [vmem:[%s118 + $0x60] sm:$0xff] %vm251, %v247
        %265 = vst.msk [vmem:[%s118 + $0x68] sm:$0xff] %vm251, %v248
        %266 = vst.msk [vmem:[%s118 + $0x70] sm:$0xff] %vm251, %v249
        %267 = vst.msk [vmem:[%s118 + $0x78] sm:$0xff] %vm251, %v250
        %s268 = sand.u32 %s46, 1
        %s269 = sand.u32 %s46, 1
        %s270 = smul.addr %s269, 128
        %s271 = scalar_lea.vmem [#allocation2], %s270
        // Predicated region
        $region25: #{tpu_custom_call.1} parent=23 // pred_check
          %p272 = pneg %p56
        $region26: #{tpu_custom_call.1} parent=23 // pred_check_branch
          %274 = sbr.rel (%p272) target = $region28
        $region27: #{tpu_custom_call.1} parent=23 // pred_region
          %s275 = smul.u32 16, %s12
          %s276 = ssub.s32 38, %s275
          %p277 = scmp.lt.s32.totalorder %s276, 16
          %s278 = scalar_select %p277, %s276, 16
          %s279 = smul.u32 128, %s278
          %p280 = scmp.ne.s32.totalorder 0, %s279
          %s281 = smul.addr %s275, 8
          %s282 = scalar_lea.vmem %s1, %s281
          // Predicated region
          $region29: #{tpu_custom_call.1} parent=27 // pred_check
            %p283 = pneg %p280
          $region30: #{tpu_custom_call.1} parent=27 // pred_check_branch
            %285 = sbr.rel (%p283) target = $region32
          $region31: #{tpu_custom_call.1} parent=27 // pred_region
            // Predicated region
            $region33: #{tpu_custom_call.1} parent=31 // pred_check
              _
            $region34: #{tpu_custom_call.1} parent=31 // pred_check_branch
              %287 = sbr.rel (0) target = $region36
            $region35: #{tpu_custom_call.1} parent=31 // pred_region
              // Predicated region
              $region55: #{tpu_custom_call.1} parent=35 // pred_check
                _
              $region56: #{tpu_custom_call.1} parent=35 // pred_check_branch
                %366 = sbr.rel (0) target = $region58
              $region57: #{tpu_custom_call.1} parent=35 // pred_region
                %s367 = sshrl.u32 %s278, 4
                // While loop
                $region59: #{tpu_custom_call.1} parent=57 // loop_pre_header
                  _
                $region60: #{tpu_custom_call.1} parent=57 // loop_header
                  %s369 = sphi 0, %s371
                  %p370 = scmp.ge.s32.totalorder %s369, %s367
                  %s374 = sphi 0, %s411
                  %s375 = sphi %s271, %s414
                  %s376 = sphi %s282, %s415
                $region61: #{tpu_custom_call.1} parent=57 // loop_header_branch
                  %373 = sbr.rel (%p370) target = $region65
                $region62: #{tpu_custom_call.1} parent=57 // loop_body
                  %v377 = vld [vmem:[%s375] sm:$0xff]
                  %378 = vst [vmem:[%s376] sm:$0xff] %v377
                  %v379 = vld [vmem:[%s375 + $0x8] sm:$0xff]
                  %380 = vst [vmem:[%s376 + $0x8] sm:$0xff] %v379
                  %v381 = vld [vmem:[%s375 + $0x10] sm:$0xff]
                  %382 = vst [vmem:[%s376 + $0x10] sm:$0xff] %v381
                  %v383 = vld [vmem:[%s375 + $0x18] sm:$0xff]
                  %384 = vst [vmem:[%s376 + $0x18] sm:$0xff] %v383
                  %v385 = vld [vmem:[%s375 + $0x20] sm:$0xff]
                  %386 = vst [vmem:[%s376 + $0x20] sm:$0xff] %v385
                  %v387 = vld [vmem:[%s375 + $0x28] sm:$0xff]
                  %388 = vst [vmem:[%s376 + $0x28] sm:$0xff] %v387
                  %v389 = vld [vmem:[%s375 + $0x30] sm:$0xff]
                  %390 = vst [vmem:[%s376 + $0x30] sm:$0xff] %v389
                  %v391 = vld [vmem:[%s375 + $0x38] sm:$0xff]
                  %392 = vst [vmem:[%s376 + $0x38] sm:$0xff] %v391
                  %v393 = vld [vmem:[%s375 + $0x40] sm:$0xff]
                  %394 = vst [vmem:[%s376 + $0x40] sm:$0xff] %v393
                  %v395 = vld [vmem:[%s375 + $0x48] sm:$0xff]
                  %396 = vst [vmem:[%s376 + $0x48] sm:$0xff] %v395
                  %v397 = vld [vmem:[%s375 + $0x50] sm:$0xff]
                  %398 = vst [vmem:[%s376 + $0x50] sm:$0xff] %v397
                  %v399 = vld [vmem:[%s375 + $0x58] sm:$0xff]
                  %400 = vst [vmem:[%s376 + $0x58] sm:$0xff] %v399
                  %v401 = vld [vmem:[%s375 + $0x60] sm:$0xff]
                  %402 = vst [vmem:[%s376 + $0x60] sm:$0xff] %v401
                  %v403 = vld [vmem:[%s375 + $0x68] sm:$0xff]
                  %404 = vst [vmem:[%s376 + $0x68] sm:$0xff] %v403
                  %v405 = vld [vmem:[%s375 + $0x70] sm:$0xff]
                  %406 = vst [vmem:[%s376 + $0x70] sm:$0xff] %v405
                  %v407 = vld [vmem:[%s375 + $0x78] sm:$0xff]
                  %408 = vst [vmem:[%s376 + $0x78] sm:$0xff] %v407
                  %s409 = sadd.s32 1, %s374
                  %p410 = scmp.ge.s32.totalorder %s409, %s367
                  %s411 = scalar_select %p410, 0, %s409
                  %s412 = smul.u32 %s411, 128
                  %s413 = smul.u32 %s411, 128
                  %s414 = scalar_lea.vmem %s271, %s412 [#allocation2]
                  %s415 = scalar_lea.vmem %s282, %s413
                $region63: #{tpu_custom_call.1} parent=57 // loop_footer
                  %s371 = sadd.s32 %s369, 1
                $region64: #{tpu_custom_call.1} parent=57 // loop_footer_branch
                  %368 = sbr.rel target = $region60
                $region65: #{tpu_custom_call.1} parent=57 // loop_exit
                  _
                %s416 = sshrl.u32 %s278, 4
                %s417 = sand.u32 %s278, 15
                %s418 = smul.u32 %s416, 16
                %s419 = smul.u32 8, %s418
                %s420 = scalar_lea.vmem %s271, %s419 [#allocation2]
                %s421 = smul.u32 8, %s418
                %s422 = scalar_lea.vmem %s282, %s421
                // While loop
                $region66: #{tpu_custom_call.1} parent=57 // loop_pre_header
                  _
                $region67: #{tpu_custom_call.1} parent=57 // loop_header
                  %s424 = sphi 0, %s426
                  %p425 = scmp.ge.s32.totalorder %s424, %s417
                  %s429 = sphi 0, %s436
                  %s430 = sphi %s420, %s439
                  %s431 = sphi %s422, %s440
                $region68: #{tpu_custom_call.1} parent=57 // loop_header_branch
                  %428 = sbr.rel (%p425) target = $region72
                $region69: #{tpu_custom_call.1} parent=57 // loop_body
                  %v432 = vld [vmem:[%s430] sm:$0xff]
                  %433 = vst [vmem:[%s431] sm:$0xff] %v432
                  %s434 = sadd.s32 1, %s429
                  %p435 = scmp.ge.s32.totalorder %s434, %s417
                  %s436 = scalar_select %p435, 0, %s434
                  %s437 = smul.u32 %s436, 8
                  %s438 = smul.u32 %s436, 8
                  %s439 = scalar_lea.vmem %s420, %s437 [#allocation2]
                  %s440 = scalar_lea.vmem %s422, %s438
                $region70: #{tpu_custom_call.1} parent=57 // loop_footer
                  %s426 = sadd.s32 %s424, 1
                $region71: #{tpu_custom_call.1} parent=57 // loop_footer_branch
                  %423 = sbr.rel target = $region67
                $region72: #{tpu_custom_call.1} parent=57 // loop_exit
                  _
              $region58: #{tpu_custom_call.1} parent=35 // pred_fallthru
                _
              // Predicated region
              $region73: #{tpu_custom_call.1} parent=35 // pred_check
                _
              $region74: #{tpu_custom_call.1} parent=35 // pred_check_branch
                %442 = sbr.rel target = $region76
              $region75: #{tpu_custom_call.1} parent=35 // pred_region
                _
              $region76: #{tpu_custom_call.1} parent=35 // pred_fallthru
                _
            $region36: #{tpu_custom_call.1} parent=31 // pred_fallthru
              _
            // Predicated region
            $region37: #{tpu_custom_call.1} parent=31 // pred_check
              _
            $region38: #{tpu_custom_call.1} parent=31 // pred_check_branch
              %289 = sbr.rel target = $region40
            $region39: #{tpu_custom_call.1} parent=31 // pred_region
              %s291 = sshrl.u32 %s278, 4
              // While loop
              $region41: #{tpu_custom_call.1} parent=39 // loop_pre_header
                _
              $region42: #{tpu_custom_call.1} parent=39 // loop_header
                %s293 = sphi 0, %s295
                %p294 = scmp.ge.s32.totalorder %s293, %s291
                %s298 = sphi 0, %s335
                %s299 = sphi %s271, %s338
                %s300 = sphi %s282, %s339
              $region43: #{tpu_custom_call.1} parent=39 // loop_header_branch
                %297 = sbr.rel (%p294) target = $region47
              $region44: #{tpu_custom_call.1} parent=39 // loop_body
                %v301 = vld [vmem:[%s299] sm:$0xff]
                %302 = vst [vmem:[%s300] sm:$0xff] %v301
                %v303 = vld [vmem:[%s299 + $0x8] sm:$0xff]
                %304 = vst [vmem:[%s300 + $0x8] sm:$0xff] %v303
                %v305 = vld [vmem:[%s299 + $0x10] sm:$0xff]
                %306 = vst [vmem:[%s300 + $0x10] sm:$0xff] %v305
                %v307 = vld [vmem:[%s299 + $0x18] sm:$0xff]
                %308 = vst [vmem:[%s300 + $0x18] sm:$0xff] %v307
                %v309 = vld [vmem:[%s299 + $0x20] sm:$0xff]
                %310 = vst [vmem:[%s300 + $0x20] sm:$0xff] %v309
                %v311 = vld [vmem:[%s299 + $0x28] sm:$0xff]
                %312 = vst [vmem:[%s300 + $0x28] sm:$0xff] %v311
                %v313 = vld [vmem:[%s299 + $0x30] sm:$0xff]
                %314 = vst [vmem:[%s300 + $0x30] sm:$0xff] %v313
                %v315 = vld [vmem:[%s299 + $0x38] sm:$0xff]
                %316 = vst [vmem:[%s300 + $0x38] sm:$0xff] %v315
                %v317 = vld [vmem:[%s299 + $0x40] sm:$0xff]
                %318 = vst [vmem:[%s300 + $0x40] sm:$0xff] %v317
                %v319 = vld [vmem:[%s299 + $0x48] sm:$0xff]
                %320 = vst [vmem:[%s300 + $0x48] sm:$0xff] %v319
                %v321 = vld [vmem:[%s299 + $0x50] sm:$0xff]
                %322 = vst [vmem:[%s300 + $0x50] sm:$0xff] %v321
                %v323 = vld [vmem:[%s299 + $0x58] sm:$0xff]
                %324 = vst [vmem:[%s300 + $0x58] sm:$0xff] %v323
                %v325 = vld [vmem:[%s299 + $0x60] sm:$0xff]
                %326 = vst [vmem:[%s300 + $0x60] sm:$0xff] %v325
                %v327 = vld [vmem:[%s299 + $0x68] sm:$0xff]
                %328 = vst [vmem:[%s300 + $0x68] sm:$0xff] %v327
                %v329 = vld [vmem:[%s299 + $0x70] sm:$0xff]
                %330 = vst [vmem:[%s300 + $0x70] sm:$0xff] %v329
                %v331 = vld [vmem:[%s299 + $0x78] sm:$0xff]
                %332 = vst [vmem:[%s300 + $0x78] sm:$0xff] %v331
                %s333 = sadd.s32 1, %s298
                %p334 = scmp.ge.s32.totalorder %s333, %s291
                %s335 = scalar_select %p334, 0, %s333
                %s336 = smul.u32 %s335, 128
                %s337 = smul.u32 %s335, 128
                %s338 = scalar_lea.vmem %s271, %s336 [#allocation2]
                %s339 = scalar_lea.vmem %s282, %s337
              $region45: #{tpu_custom_call.1} parent=39 // loop_footer
                %s295 = sadd.s32 %s293, 1
              $region46: #{tpu_custom_call.1} parent=39 // loop_footer_branch
                %292 = sbr.rel target = $region42
              $region47: #{tpu_custom_call.1} parent=39 // loop_exit
                _
              %s340 = sshrl.u32 %s278, 4
              %s341 = sand.u32 %s278, 15
              %s342 = smul.u32 %s340, 16
              %s343 = smul.u32 8, %s342
              %s344 = scalar_lea.vmem %s271, %s343 [#allocation2]
              %s345 = smul.u32 8, %s342
              %s346 = scalar_lea.vmem %s282, %s345
              // While loop
              $region48: #{tpu_custom_call.1} parent=39 // loop_pre_header
                _
              $region49: #{tpu_custom_call.1} parent=39 // loop_header
                %s348 = sphi 0, %s350
                %p349 = scmp.ge.s32.totalorder %s348, %s341
                %s353 = sphi 0, %s360
                %s354 = sphi %s344, %s363
                %s355 = sphi %s346, %s364
              $region50: #{tpu_custom_call.1} parent=39 // loop_header_branch
                %352 = sbr.rel (%p349) target = $region54
              $region51: #{tpu_custom_call.1} parent=39 // loop_body
                %v356 = vld [vmem:[%s354] sm:$0xff]
                %357 = vst [vmem:[%s355] sm:$0xff] %v356
                %s358 = sadd.s32 1, %s353
                %p359 = scmp.ge.s32.totalorder %s358, %s341
                %s360 = scalar_select %p359, 0, %s358
                %s361 = smul.u32 %s360, 8
                %s362 = smul.u32 %s360, 8
                %s363 = scalar_lea.vmem %s344, %s361 [#allocation2]
                %s364 = scalar_lea.vmem %s346, %s362
              $region52: #{tpu_custom_call.1} parent=39 // loop_footer
                %s350 = sadd.s32 %s348, 1
              $region53: #{tpu_custom_call.1} parent=39 // loop_footer_branch
                %347 = sbr.rel target = $region49
              $region54: #{tpu_custom_call.1} parent=39 // loop_exit
                _
            $region40: #{tpu_custom_call.1} parent=31 // pred_fallthru
              _
          $region32: #{tpu_custom_call.1} parent=27 // pred_fallthru
            _
          %443 = vnop
        $region28: #{tpu_custom_call.1} parent=23 // pred_fallthru
          _
      $region24: #{tpu_custom_call.1} parent=5 // pred_fallthru
        _
      %p444 = scmp.le.s32.totalorder 2, %s7
      // Predicated region
      $region77: #{tpu_custom_call.1} parent=5 // pred_check
        %p445 = pneg %p444
      $region78: #{tpu_custom_call.1} parent=5 // pred_check_branch
        %447 = sbr.rel (%p445) target = $region80
      $region79: #{tpu_custom_call.1} parent=5 // pred_region
        %s448 = ssub.s32 %s7, 2
        // Predicated region
        $region81: #{tpu_custom_call.1} parent=79 // pred_check
          %p449 = pneg %p62
        $region82: #{tpu_custom_call.1} parent=79 // pred_check_branch
          %451 = sbr.rel (%p449) target = $region84
        $region83: #{tpu_custom_call.1} parent=79 // pred_region
          %s452 = sand.u32 %s47, 1
          %s453 = sand.u32 %s47, 1
          %s454 = smul.addr %s453, 128
          %s455 = scalar_lea.vmem [#allocation2], %s454
        $region84: #{tpu_custom_call.1} parent=79 // pred_fallthru
          _
      $region80: #{tpu_custom_call.1} parent=5 // pred_fallthru
        _
    $region6: #{tpu_custom_call.1} parent=1 // loop_footer
      %s11 = sadd.s32 1, %s7
    $region7: #{tpu_custom_call.1} parent=1 // loop_footer_branch
      %6 = sbr.rel target = $region3
    $region8: #{tpu_custom_call.1} parent=1 // loop_exit
      _

</llo_original>
